<compile_context>
chip_gen: v7x
topology: tpu7x:2x2x1
jax: 0.10.0
libtpu: 0.0.40
codegen_flags: <defaults>
</compile_context>

<pallas_src>
import jax
import jax.numpy as jnp
from jax import lax
from jax.experimental import pallas as pl
from jax.experimental.pallas import tpu as pltpu


def _round_up(x, m):
    return ((x + m - 1) // m) * m


def cmatt_kernel(l1_ref, l2_ref, s1_ref, s2_ref, u_ref, a_ref):
    b = pl.program_id(0)
    q = pl.program_id(1)
    len1 = l1_ref[b]                    # scalar int32 from SMEM
    len2 = l2_ref[b]

    x1 = s1_ref[0]                      # (TQ,  Dp)
    x2 = s2_ref[0]                      # (t2p, Dp)
    tq = x1.shape[0]
    t2p = x2.shape[0]

    # TODO(synk): cast matmul operands to bf16 (keep f32 accumulation) if the
    # model tolerates it — halves HBM traffic and uses bf16 MXU throughput.
    # scores: contract the feature dim directly (no transpose of x2).
    s = lax.dot_general(
        x1, x2,
        dimension_numbers=(((1,), (1,)), ((), ())),
        preferred_element_type=jnp.float32)                      # (TQ, t2p)

    # column mask as a (1, t2p) additive bias; row mask as a (TQ, 1) bool.
    col = lax.broadcasted_iota(jnp.int32, (1, t2p), 1)
    col_bias = jnp.where(col < len2, jnp.float32(0.0), jnp.float32(-jnp.inf))
    row = lax.broadcasted_iota(jnp.int32, (tq, 1), 0) + q * tq
    row_valid = row < len1

    s = s + col_bias

    # numerically-stable softmax; fully-masked rows give all-zero weights
    # (matches masked_fill(a != a, 0) in the PyTorch module).
    m = jnp.max(s, axis=-1, keepdims=True)                       # (TQ, 1)
    m_safe = jnp.maximum(m, jnp.float32(jnp.finfo(jnp.float32).min))
    p = jnp.exp(s - m_safe)                                      # 0 at masked cols
    denom = jnp.sum(p, axis=-1, keepdims=True)                   # (TQ, 1)
    inv = pl.reciprocal(denom, approx=True)                      # EUP slot
    inv = inv * (jnp.float32(2.0) - denom * inv)                 # 1 Newton step
    keep = row_valid & (denom > 0.0)                             # (TQ, 1)
    a = jnp.where(keep, p * inv, jnp.float32(0.0))               # (TQ, t2p)

    # attended vectors: a @ s2 -> (TQ, Dp) on the MXU.
    u = jnp.dot(a.astype(x2.dtype), x2, preferred_element_type=jnp.float32)

    u_ref[0] = u.astype(u_ref.dtype)
    a_ref[0] = a.astype(a_ref.dtype)


def _pick_tq(t1, t2p, dp, in_item, out_item, budget_bytes=20 * 1024 * 1024):
    """Largest t1 tile (multiple of 8) whose double-buffered blocks plus the
    in-kernel f32 intermediates fit a conservative VMEM budget (sized so the
    same tile also fits v7x's 64 MiB physical VMEM)."""
    tq = min(_round_up(t1, 8), 512)
    while tq > 8:
        blocks = 2 * ((tq * dp + t2p * dp) * in_item
                      + (tq * dp + tq * t2p) * out_item)
        interm = 5 * tq * t2p * 4                    # s, p, a + slack (f32)
        if blocks + interm <= budget_bytes:
            break
        tq = max(8, _round_up(tq // 2, 8))
    return tq


def cmatten_pallas(s1, l1, s2, l2):
    """s1: [B,t1,D], l1: [B], s2: [B,t2,D], l2: [B] -> (u_tile, a_weight)."""
    B, t1, D = s1.shape
    _, t2, _ = s2.shape
    out_dtype = s1.dtype
    in_item = jnp.dtype(s1.dtype).itemsize
    out_item = jnp.dtype(out_dtype).itemsize

    # TODO(synk): for very long t2, switch to a two-pass online softmax over
    # t2 tiles so per-step VMEM no longer scales with t2.
    dp = _round_up(D, 128)           # lane dim for s1 / s2 / u
    t2p = _round_up(t2, 128)         # lane dim for a_weight -> lane-dense vst
    tq = _pick_tq(t1, t2p, dp, in_item, out_item)
    t1p = _round_up(t1, tq)

    # Zero padding is exact: padded feature cols contribute 0 to the dot
    # products; padded rows/cols sit at indices >= l1/l2 and are masked to 0.
    s1p = jnp.pad(s1, ((0, 0), (0, t1p - t1), (0, dp - D)))
    s2p = jnp.pad(s2, ((0, 0), (0, t2p - t2), (0, dp - D)))
    l1 = l1.astype(jnp.int32)
    l2 = l2.astype(jnp.int32)

    grid = (B, t1p // tq)

    grid_spec = pltpu.PrefetchScalarGridSpec(
        num_scalar_prefetch=2,                       # l1, l2 -> SMEM
        grid=grid,
        in_specs=[
            pl.BlockSpec((1, tq, dp), lambda b, q, l1r, l2r: (b, q, 0)),
            # constant over the t1 axis -> the s2 block DMA is reused
            pl.BlockSpec((1, t2p, dp), lambda b, q, l1r, l2r: (b, 0, 0)),
        ],
        out_specs=[
            pl.BlockSpec((1, tq, dp), lambda b, q, l1r, l2r: (b, q, 0)),
            pl.BlockSpec((1, tq, t2p), lambda b, q, l1r, l2r: (b, q, 0)),
        ],
    )

    flops = 4 * B * t1p * t2p * dp                   # two MXU matmuls
    transcendentals = B * t1p * t2p                  # exp per score
    bytes_accessed = (B * t1p * dp * in_item + B * t2p * dp * in_item
                      + B * t1p * dp * out_item + B * t1p * t2p * out_item)

    blk_bytes = 2 * ((tq * dp + t2p * dp) * in_item
                     + (tq * dp + tq * t2p) * out_item)
    vmem_limit = int(min(100 * 1024 * 1024,
                         max(32 * 1024 * 1024,
                             2 * blk_bytes + 8 * tq * t2p * 4)))

    u_p, a_p = pl.pallas_call(
        cmatt_kernel,
        grid_spec=grid_spec,
        out_shape=(
            jax.ShapeDtypeStruct((B, t1p, dp), out_dtype),    # u_tile (padded)
            jax.ShapeDtypeStruct((B, t1p, t2p), out_dtype),   # a_weight (padded)
        ),
        compiler_params=pltpu.CompilerParams(
            dimension_semantics=("parallel", "parallel"),
            vmem_limit_bytes=vmem_limit),
        cost_estimate=pl.CostEstimate(
            flops=flops,
            transcendentals=transcendentals,
            bytes_accessed=bytes_accessed),
    )(l1, l2, s1p, s2p)

    return u_p[:, :t1, :D], a_p[:, :t1, :t2]


def cmatten_ref(s1, l1, s2, l2):
    """Pure-JAX reference matching the PyTorch forward."""
    s = jnp.einsum("btd,bkd->btk", s1, s2)
    B, t1, t2 = s.shape
    row = jnp.arange(t1)[None, :, None]
    col = jnp.arange(t2)[None, None, :]
    valid = (row < l1[:, None, None]) & (col < l2[:, None, None])
    s = jnp.where(valid, s, -jnp.inf)
    a = jax.nn.softmax(s, axis=-1)
    a = jnp.where(jnp.isnan(a), 0.0, a)
    u = jnp.einsum("btk,bkd->btd", a, s2)
    return u, a


if __name__ == "__main__":
    key = jax.random.PRNGKey(0)
    k1, k2 = jax.random.split(key)

    B, t1, t2, D = 2, 8, 8, 32
    s1 = jax.random.normal(k1, (B, t1, D), dtype=jnp.float32)
    s2 = jax.random.normal(k2, (B, t2, D), dtype=jnp.float32)
    l1 = jnp.array([6, 8], dtype=jnp.int32)   # valid lengths in s1
    l2 = jnp.array([5, 8], dtype=jnp.int32)   # valid lengths in s2

    u_tile, a_weight = jax.block_until_ready(cmatten_pallas(s1, l1, s2, l2))
    u_ref, a_ref = cmatten_ref(s1, l1, s2, l2)

    # Tolerance accounts for the EUP approx-reciprocal (+1 Newton step)
    # softmax normalization; accumulation itself stays in f32.
    assert u_tile.shape == (B, t1, D) and a_weight.shape == (B, t1, t2)
    assert jnp.allclose(u_tile, u_ref, atol=1e-4, rtol=1e-4)
    assert jnp.allclose(a_weight, a_ref, atol=1e-4, rtol=1e-4)
    print("KERNEL_OK")
</pallas_src>

<mosaic_0001>
module attributes {stable_mosaic.version = 11 : i64} {
  func.func @cmatt_kernel(%arg0: i32, %arg1: i32, %arg2: memref<2xi32, #tpu.memory_space<smem>>, %arg3: memref<2xi32, #tpu.memory_space<smem>>, %arg4: memref<1x8x128xf32, #tpu.memory_space<vmem>>, %arg5: memref<1x128x128xf32, #tpu.memory_space<vmem>>, %arg6: memref<1x8x128xf32, #tpu.memory_space<vmem>>, %arg7: memref<1x8x128xf32, #tpu.memory_space<vmem>>) attributes {dimension_semantics = [#tpu.dimension_semantics<parallel>, #tpu.dimension_semantics<parallel>], iteration_bounds = array<i64: 2, 1>, scalar_prefetch = 2 : i64, scratch_operands = 0 : i64, tpu.core_type = #tpu.core_type<tc>, window_params = [{transform_indices = @transform_0, window_bounds = array<i64: 1, 8, 128>}, {transform_indices = @transform_1, window_bounds = array<i64: 1, 128, 128>}, {transform_indices = @transform_2, window_bounds = array<i64: 1, 8, 128>}, {transform_indices = @transform_3, window_bounds = array<i64: 1, 8, 128>}]} {
    %0 = arith.index_cast %arg0 : i32 to index
    %1 = memref.load %arg2[%0] : memref<2xi32, #tpu.memory_space<smem>>
    %2 = arith.index_cast %arg0 : i32 to index
    %3 = memref.load %arg3[%2] : memref<2xi32, #tpu.memory_space<smem>>
    %c0 = arith.constant 0 : index
    %c0_0 = arith.constant 0 : index
    %c0_1 = arith.constant 0 : index
    %4 = vector.load %arg4[%c0, %c0_0, %c0_1] : memref<1x8x128xf32, #tpu.memory_space<vmem>>, vector<1x8x128xf32>
    %5 = vector.shape_cast %4 : vector<1x8x128xf32> to vector<8x128xf32>
    %c0_2 = arith.constant 0 : index
    %c0_3 = arith.constant 0 : index
    %c0_4 = arith.constant 0 : index
    %6 = vector.load %arg5[%c0_2, %c0_3, %c0_4] : memref<1x128x128xf32, #tpu.memory_space<vmem>>, vector<1x128x128xf32>
    %7 = vector.shape_cast %6 : vector<1x128x128xf32> to vector<128x128xf32>
    %cst = arith.constant dense<0.000000e+00> : vector<8x128xf32>
    %8 = tpu.matmul %5, %7, %cst {dimension_numbers = #tpu.dot_dimension_numbers<[1], [1], [0], [0], [0, 0, 1, 0], [], []>} : vector<8x128xf32>, vector<128x128xf32>, vector<8x128xf32> -> vector<8x128xf32>
    %9 = tpu.iota {dimensions = array<i32: 1>} : vector<1x128xi32>
    %10 = vector.broadcast %3 : i32 to vector<1x128xi32>
    %11 = arith.cmpi slt, %9, %10 : vector<1x128xi32>
    %cst_5 = arith.constant 0.000000e+00 : f32
    %cst_6 = arith.constant 0xFF800000 : f32
    %12 = vector.broadcast %cst_5 : f32 to vector<1x128xf32>
    %13 = vector.broadcast %cst_6 : f32 to vector<1x128xf32>
    %14 = arith.select %11, %12, %13 : vector<1x128xi1>, vector<1x128xf32>
    %15 = tpu.iota {dimensions = array<i32: 0>} : vector<8x1xi32>
    %c8_i32 = arith.constant 8 : i32
    %16 = arith.muli %arg1, %c8_i32 : i32
    %17 = vector.broadcast %16 : i32 to vector<8x1xi32>
    %18 = arith.addi %15, %17 : vector<8x1xi32>
    %19 = vector.broadcast %1 : i32 to vector<8x1xi32>
    %20 = arith.cmpi slt, %18, %19 : vector<8x1xi32>
    %21 = vector.broadcast %14 : vector<1x128xf32> to vector<8x128xf32>
    %22 = arith.addf %8, %21 : vector<8x128xf32>
    %cst_7 = arith.constant dense<0xFF800000> : vector<8xf32>
    %23 = vector.multi_reduction <maximumf>, %22, %cst_7 [1] : vector<8x128xf32> to vector<8xf32>
    %24 = vector.shape_cast %23 : vector<8xf32> to vector<8x1xf32>
    %cst_8 = arith.constant -3.40282347E+38 : f32
    %25 = vector.broadcast %cst_8 : f32 to vector<8x1xf32>
    %26 = arith.maximumf %24, %25 : vector<8x1xf32>
    %27 = vector.broadcast %26 : vector<8x1xf32> to vector<8x128xf32>
    %28 = arith.subf %22, %27 : vector<8x128xf32>
    %29 = math.exp %28 : vector<8x128xf32>
    %cst_9 = arith.constant dense<0.000000e+00> : vector<8xf32>
    %30 = vector.multi_reduction <add>, %29, %cst_9 [1] : vector<8x128xf32> to vector<8xf32>
    %31 = vector.shape_cast %30 : vector<8xf32> to vector<8x1xf32>
    %32 = tpu.reciprocal %31 {approx = true} : vector<8x1xf32> -> vector<8x1xf32>
    %33 = arith.mulf %31, %32 : vector<8x1xf32>
    %cst_10 = arith.constant 2.000000e+00 : f32
    %34 = vector.broadcast %cst_10 : f32 to vector<8x1xf32>
    %35 = arith.subf %34, %33 : vector<8x1xf32>
    %36 = arith.mulf %32, %35 : vector<8x1xf32>
    %cst_11 = arith.constant 0.000000e+00 : f32
    %37 = vector.broadcast %cst_11 : f32 to vector<8x1xf32>
    %38 = arith.cmpf ogt, %31, %37 : vector<8x1xf32>
    %39 = arith.andi %20, %38 : vector<8x1xi1>
    %40 = vector.broadcast %36 : vector<8x1xf32> to vector<8x128xf32>
    %41 = arith.mulf %29, %40 : vector<8x128xf32>
    %cst_12 = arith.constant 0.000000e+00 : f32
    %42 = vector.shape_cast %39 : vector<8x1xi1> to vector<8x1xi1>
    %43 = vector.broadcast %42 : vector<8x1xi1> to vector<8x128xi1>
    %44 = vector.broadcast %cst_12 : f32 to vector<8x128xf32>
    %45 = arith.select %43, %41, %44 : vector<8x128xi1>, vector<8x128xf32>
    %cst_13 = arith.constant dense<0.000000e+00> : vector<8x128xf32>
    %46 = tpu.matmul %45, %7, %cst_13 {dimension_numbers = #tpu.dot_dimension_numbers<[1], [0], [0], [1], [0, 0, 1, 1], [], []>} : vector<8x128xf32>, vector<128x128xf32>, vector<8x128xf32> -> vector<8x128xf32>
    %c0_14 = arith.constant 0 : index
    %c0_15 = arith.constant 0 : index
    %c0_16 = arith.constant 0 : index
    %47 = vector.load %arg6[%c0_14, %c0_15, %c0_16] : memref<1x8x128xf32, #tpu.memory_space<vmem>>, vector<1x8x128xf32>
    %48 = vector.shape_cast %47 : vector<1x8x128xf32> to vector<8x128xf32>
    %49 = vector.shape_cast %46 : vector<8x128xf32> to vector<1x8x128xf32>
    tpu.vector_store %arg6[%c0_14, %c0_15, %c0_16], %49 {strides = array<i32>} : memref<1x8x128xf32, #tpu.memory_space<vmem>>, vector<1x8x128xf32>,
    %c0_17 = arith.constant 0 : index
    %c0_18 = arith.constant 0 : index
    %c0_19 = arith.constant 0 : index
    %50 = vector.load %arg7[%c0_17, %c0_18, %c0_19] : memref<1x8x128xf32, #tpu.memory_space<vmem>>, vector<1x8x128xf32>
    %51 = vector.shape_cast %50 : vector<1x8x128xf32> to vector<8x128xf32>
    %52 = vector.shape_cast %45 : vector<8x128xf32> to vector<1x8x128xf32>
    tpu.vector_store %arg7[%c0_17, %c0_18, %c0_19], %52 {strides = array<i32>} : memref<1x8x128xf32, #tpu.memory_space<vmem>>, vector<1x8x128xf32>,
    return
  }
  func.func @transform_0(%arg0: i32, %arg1: i32, %arg2: memref<2xi32, #tpu.memory_space<smem>>, %arg3: memref<2xi32, #tpu.memory_space<smem>>) -> (i32, i32, i32) {
    %c0_i32 = arith.constant 0 : i32
    %c0_i32_0 = arith.constant 0 : i32
    return %arg0, %arg1, %c0_i32 : i32, i32, i32
  }
  func.func @transform_1(%arg0: i32, %arg1: i32, %arg2: memref<2xi32, #tpu.memory_space<smem>>, %arg3: memref<2xi32, #tpu.memory_space<smem>>) -> (i32, i32, i32) {
    %c0_i32 = arith.constant 0 : i32
    %c0_i32_0 = arith.constant 0 : i32
    %c0_i32_1 = arith.constant 0 : i32
    return %arg0, %c0_i32, %c0_i32_0 : i32, i32, i32
  }
  func.func @transform_2(%arg0: i32, %arg1: i32, %arg2: memref<2xi32, #tpu.memory_space<smem>>, %arg3: memref<2xi32, #tpu.memory_space<smem>>) -> (i32, i32, i32) {
    %c0_i32 = arith.constant 0 : i32
    %c0_i32_0 = arith.constant 0 : i32
    return %arg0, %arg1, %c0_i32 : i32, i32, i32
  }
  func.func @transform_3(%arg0: i32, %arg1: i32, %arg2: memref<2xi32, #tpu.memory_space<smem>>, %arg3: memref<2xi32, #tpu.memory_space<smem>>) -> (i32, i32, i32) {
    %c0_i32 = arith.constant 0 : i32
    %c0_i32_0 = arith.constant 0 : i32
    return %arg0, %arg1, %c0_i32 : i32, i32, i32
  }
}

</mosaic_0001>

<llo_original>
// kernel: tpu_custom_call.1
$region0: #{tpu_custom_call.1}
  #allocation0 [shape = 'u32[]', space=smem, size = 0x4, offset = 0x4, fixed_abs, tag = 'smem constant byte address 0x4 - core index']
  #allocation1 [shape = 'u32[144,128]{1,0:T(1,128)}', space=vmem, size = 0x12000, scoped, tag = 'internal scratch']
  #allocation2 [shape = 's32[1]{0}', space=sflag, size = 0x4, scoped, tag = 'scoped memory for tpu_custom_call.1']
  #allocation3 [shape = 'u8[512]{0}', space=smem, size = 0x200, scoped, tag = 'prefetched SMEM operand 0']
  #allocation4 [shape = 'u8[512]{0}', space=smem, size = 0x200, scoped, tag = 'prefetched SMEM operand 1']
  %s0 = inlined_call_operand.hbm [shape: s32[2], index: 0, kind: input, shape index: {}]
  %s1 = inlined_call_operand.vmem [shape: s32[2], index: 1, kind: input, shape index: {}]
  %s2 = inlined_call_operand.hbm [shape: f32[2,8,128], index: 2, kind: input, shape index: {}]
  %s3 = inlined_call_operand.hbm [shape: f32[2,128,128], index: 3, kind: input, shape index: {}]
  %s4 = inlined_call_operand.hbm [shape: f32[2,8,128], index: 4, kind: output, shape index: {0}]
  %s5 = inlined_call_operand.hbm [shape: f32[2,8,128], index: 5, kind: output, shape index: {1}]
  %6 = xla_tuple %s4, %s5
  %s7 = sld [smem:[#allocation0]]
  $region57: #{tpu_custom_call.1} parent=0
    _
  %s9 = ssub.s32 1, %s7
  %s10 = scalar_select 0, %s9, %s7
  %12 = dma.hbm_to_smem %s0, 16, [#allocation3], [#allocation2]
  %s13 = sshll.u32 %s1, 4
  %s14 = int_to_ptr.vmem [resolvable:$true] %s13
  %16 = dma.vmem_to_smem %s14, 16, [#allocation4], [#allocation2]
  %17 = dma.done [#allocation2], 32
  %18 = sfence
  $region1: #{tpu_custom_call.1} parent=0
    #allocation5 [shape = 'u8[8192]{0}', space=vmem, size = 0x2000, scoped, tag = 'input window, operand 2']
    #allocation6 [shape = 's32[2]{0}', space=sflag, size = 0x8, scoped, tag = 'scoped memory for tpu_custom_call.1']
    #allocation7 [shape = 's32[2]{0}', space=sflag, size = 0x8, scoped, tag = 'scoped memory for tpu_custom_call.1']
    #allocation8 [shape = 'u8[131072]{0}', space=vmem, size = 0x20000, scoped, tag = 'input window, operand 3']
    #allocation9 [shape = 's32[2]{0}', space=sflag, size = 0x8, scoped, tag = 'scoped memory for tpu_custom_call.1']
    #allocation10 [shape = 'u8[8192]{0}', space=vmem, size = 0x2000, scoped, tag = 'output window, operand 0']
    #allocation11 [shape = 'u8[8192]{0}', space=vmem, size = 0x2000, scoped, tag = 'output window, operand 1']
    #allocation12 [shape = 's32[2]{0}', space=sflag, size = 0x8, scoped, tag = 'scoped memory for tpu_custom_call.1']
    %19 = vsyncpa [#allocation6], 0
    %s20 = scalar_lea.sflag [#allocation6], 1
    %21 = vsyncpa %s20, 0
    %22 = vsyncpa [#allocation9], 0
    %s23 = scalar_lea.sflag [#allocation9], 1
    %24 = vsyncpa %s23, 0
    %25 = vsyncpa [#allocation7], 0
    %s26 = scalar_lea.sflag [#allocation7], 1
    %27 = vsyncpa %s26, 0
    %28 = vsyncpa [#allocation12], 0
    %s29 = scalar_lea.sflag [#allocation12], 1
    %30 = vsyncpa %s29, 0
    loop: start=0, step=1, limit=4
    $region2: #{tpu_custom_call.1} parent=1 // loop_pre_header
      _
    $region3: #{tpu_custom_call.1} parent=1 // loop_header
      %s32 = sphi 0, %s36
      %p33 = scmp.ge.s32.totalorder %s32, 4
      %s39 = sphi 0, %s51
      %s40 = sphi 0, %s47
      %s41 = sphi 0, %s39
      %s42 = sphi 0, %s40
      %s43 = sphi 0, %s41
      %s44 = sphi 0, %s42
      %s56 = sphi 0, %s58
      %s59 = sphi 0, %s56
      %s60 = sphi 0, %s59
      %s76 = sphi 0, %s60
      %s82 = sphi 0, %s84
      %s85 = sphi 0, %s82
      %s86 = sphi 0, %s85
      %s102 = sphi 0, %s86
      %s110 = sphi 0, %s112
      %s113 = sphi 0, %s110
      %s114 = sphi 0, %s113
      %s130 = sphi 0, %s114
      %s138 = sphi 0, %s140
      %s141 = sphi 0, %s138
      %s142 = sphi 0, %s141
      %s158 = sphi 0, %s142
    $region4: #{tpu_custom_call.1} parent=1 // loop_header_branch
      %35 = sbr.rel (%p33) target = $region8
    $region5: #{tpu_custom_call.1} parent=1 // loop_body
      %s37 = ssub.s32 %s32, 1
      %s38 = ssub.s32 %s32, 2
      %s45 = sadd.s32 1, %s40
      %p46 = scmp.ge.s32.totalorder %s45, 1
      %s47 = scalar_select %p46, 0, %s45
      %s48 = sadd.s32 1, %s39
      %s49 = scalar_select %p46, %s48, %s39
      %p50 = scmp.ge.s32.totalorder %s49, 2
      %s51 = scalar_select %p50, 0, %s49
      %s52 = ssub.s32 %s39, %s51
      %s53 = ssub.s32 %s40, %s47
      %s54 = sor.u32 %s52, %s53
      %p55 = scmp.eq.s32.totalorder %s54, 0
      %s57 = sadd.s32 %s56, 1
      %s58 = scalar_select %p55, %s56, %s57
      %p61 = pneg %p55
      %p62 = scmp.eq.s32.totalorder %s32, 1
      %p63 = por %p61, %p62
      %p64 = scmp.ne.s32.totalorder %s56, %s59
      %p65 = scmp.eq.s32.totalorder %s32, 0
      %p66 = por %p64, %p65
      %p67 = scmp.ne.s32.totalorder %s56, %s59
      %p68 = scmp.eq.s32.totalorder %s37, 1
      %p69 = por %p67, %p68
      %p70 = scmp.ne.s32.totalorder %s59, %s60
      %p71 = scmp.eq.s32.totalorder %s37, 0
      %p72 = por %p70, %p71
      %p73 = scmp.ne.s32.totalorder %s59, %s60
      %p74 = scmp.eq.s32.totalorder %s38, 1
      %p75 = por %p73, %p74
      %p77 = scmp.ne.s32.totalorder %s60, %s76
      %p78 = scmp.eq.s32.totalorder %s38, 0
      %p79 = por %p77, %p78
      %s80 = ssub.s32 %s39, %s51
      %p81 = scmp.eq.s32.totalorder %s80, 0
      %s83 = sadd.s32 %s82, 1
      %s84 = scalar_select %p81, %s82, %s83
      %p87 = pneg %p81
      %p88 = scmp.eq.s32.totalorder %s32, 1
      %p89 = por %p87, %p88
      %p90 = scmp.ne.s32.totalorder %s82, %s85
      %p91 = scmp.eq.s32.totalorder %s32, 0
      %p92 = por %p90, %p91
      %p93 = scmp.ne.s32.totalorder %s82, %s85
      %p94 = scmp.eq.s32.totalorder %s37, 1
      %p95 = por %p93, %p94
      %p96 = scmp.ne.s32.totalorder %s85, %s86
      %p97 = scmp.eq.s32.totalorder %s37, 0
      %p98 = por %p96, %p97
      %p99 = scmp.ne.s32.totalorder %s85, %s86
      %p100 = scmp.eq.s32.totalorder %s38, 1
      %p101 = por %p99, %p100
      %p103 = scmp.ne.s32.totalorder %s86, %s102
      %p104 = scmp.eq.s32.totalorder %s38, 0
      %p105 = por %p103, %p104
      %s106 = ssub.s32 %s39, %s51
      %s107 = ssub.s32 %s40, %s47
      %s108 = sor.u32 %s106, %s107
      %p109 = scmp.eq.s32.totalorder %s108, 0
      %s111 = sadd.s32 %s110, 1
      %s112 = scalar_select %p109, %s110, %s111
      %p115 = pneg %p109
      %p116 = scmp.eq.s32.totalorder %s32, 1
      %p117 = por %p115, %p116
      %p118 = scmp.ne.s32.totalorder %s110, %s113
      %p119 = scmp.eq.s32.totalorder %s32, 0
      %p120 = por %p118, %p119
      %p121 = scmp.ne.s32.totalorder %s110, %s113
      %p122 = scmp.eq.s32.totalorder %s37, 1
      %p123 = por %p121, %p122
      %p124 = scmp.ne.s32.totalorder %s113, %s114
      %p125 = scmp.eq.s32.totalorder %s37, 0
      %p126 = por %p124, %p125
      %p127 = scmp.ne.s32.totalorder %s113, %s114
      %p128 = scmp.eq.s32.totalorder %s38, 1
      %p129 = por %p127, %p128
      %p131 = scmp.ne.s32.totalorder %s114, %s130
      %p132 = scmp.eq.s32.totalorder %s38, 0
      %p133 = por %p131, %p132
      %s134 = ssub.s32 %s39, %s51
      %s135 = ssub.s32 %s40, %s47
      %s136 = sor.u32 %s134, %s135
      %p137 = scmp.eq.s32.totalorder %s136, 0
      %s139 = sadd.s32 %s138, 1
      %s140 = scalar_select %p137, %s138, %s139
      %p143 = pneg %p137
      %p144 = scmp.eq.s32.totalorder %s32, 1
      %p145 = por %p143, %p144
      %p146 = scmp.ne.s32.totalorder %s138, %s141
      %p147 = scmp.eq.s32.totalorder %s32, 0
      %p148 = por %p146, %p147
      %p149 = scmp.ne.s32.totalorder %s138, %s141
      %p150 = scmp.eq.s32.totalorder %s37, 1
      %p151 = por %p149, %p150
      %p152 = scmp.ne.s32.totalorder %s141, %s142
      %p153 = scmp.eq.s32.totalorder %s37, 0
      %p154 = por %p152, %p153
      %p155 = scmp.ne.s32.totalorder %s141, %s142
      %p156 = scmp.eq.s32.totalorder %s38, 1
      %p157 = por %p155, %p156
      %p159 = scmp.ne.s32.totalorder %s142, %s158
      %p160 = scmp.eq.s32.totalorder %s38, 0
      %p161 = por %p159, %p160
      %p162 = scmp.le.s32.totalorder 1, %s32
      %p163 = scmp.lt.s32.totalorder %s32, 3
      %p164 = pnand %p162, %p163
      %p165 = pneg %p164
      // Predicated region
      $region9: #{tpu_custom_call.1} parent=5 // pred_check
        _
      $region10: #{tpu_custom_call.1} parent=5 // pred_check_branch
        %167 = sbr.rel (%p164) target = $region12
      $region11: #{tpu_custom_call.1} parent=5 // pred_region
        %s168 = ssub.s32 %s32, 1
      $region12: #{tpu_custom_call.1} parent=5 // pred_fallthru
        _
      %p169 = scmp.lt.s32.totalorder %s32, 2
      // Predicated region
      $region13: #{tpu_custom_call.1} parent=5 // pred_check
        %p170 = pneg %p169
      $region14: #{tpu_custom_call.1} parent=5 // pred_check_branch
        %172 = sbr.rel (%p170) target = $region16
      $region15: #{tpu_custom_call.1} parent=5 // pred_region
        // Predicated region
        $region17: #{tpu_custom_call.1} parent=15 // pred_check
          %p173 = pneg %p66
        $region18: #{tpu_custom_call.1} parent=15 // pred_check_branch
          %175 = sbr.rel (%p173) target = $region20
        $region19: #{tpu_custom_call.1} parent=15 // pred_region
          %s176 = sand.u32 %s56, 1
          %s177 = scalar_lea.sflag [#allocation6], %s176
          %s178 = sand.u32 %s56, 1
          %s179 = smul.addr %s178, 8
          %s180 = scalar_lea.vmem [#allocation5], %s179
          %s182 = ssub.s32 128, 128
          %183 = vsyncadd %s177, %s182
          %s184 = sadd.s32 %s40, %s39
          %s185 = smul.addr %s184, 128
          %s186 = scalar_lea.hbm %s2, %s185
          %s188 = sshll.u32 %s180, 4
          %s189 = int_to_ptr.vmem [resolvable:$true] %s188
          %191 = dma.hbm_to_vmem [thread:$0]  %s186, 128, %s189, %s177
        $region20: #{tpu_custom_call.1} parent=15 // pred_fallthru
          _
        // Predicated region
        $region21: #{tpu_custom_call.1} parent=15 // pred_check
          %p192 = pneg %p92
        $region22: #{tpu_custom_call.1} parent=15 // pred_check_branch
          %194 = sbr.rel (%p192) target = $region24
        $region23: #{tpu_custom_call.1} parent=15 // pred_region
          %s195 = sand.u32 %s82, 1
          %s196 = scalar_lea.sflag [#allocation9], %s195
          %s197 = sand.u32 %s82, 1
          %s198 = smul.addr %s197, 128
          %s199 = scalar_lea.vmem [#allocation8], %s198
          %s201 = ssub.s32 2048, 2048
          %202 = vsyncadd %s196, %s201
          %s203 = smul.addr %s39, 16
          %s204 = smul.addr %s203, 128
          %s205 = scalar_lea.hbm %s3, %s204
          %s206 = sshll.u32 %s199, 4
          %s207 = int_to_ptr.vmem [resolvable:$true] %s206
          %212 = dma.hbm_to_vmem [thread:$0]  %s205, 2048, %s207, %s196, 128, 128, 8
        $region24: #{tpu_custom_call.1} parent=15 // pred_fallthru
          _
      $region16: #{tpu_custom_call.1} parent=5 // pred_fallthru
        _
      %p213 = scmp.le.s32.totalorder 1, %s32
      %p214 = scmp.lt.s32.totalorder %s32, 3
      %p215 = pnand %p213, %p214
      %p216 = pneg %p215
      // Predicated region
      $region25: #{tpu_custom_call.1} parent=5 // pred_check
        _
      $region26: #{tpu_custom_call.1} parent=5 // pred_check_branch
        %218 = sbr.rel (%p215) target = $region28
      $region27: #{tpu_custom_call.1} parent=5 // pred_region
        %s219 = ssub.s32 %s32, 1
        %s220 = sand.u32 %s59, 1
        %s221 = scalar_lea.sflag [#allocation6], %s220
        %s222 = sand.u32 %s59, 1
        %s223 = smul.addr %s222, 8
        %s224 = scalar_lea.vmem [#allocation5], %s223
        // Predicated region
        $region29: #{tpu_custom_call.1} parent=27 // pred_check
          %p225 = pneg %p72
        $region30: #{tpu_custom_call.1} parent=27 // pred_check_branch
          %227 = sbr.rel (%p225) target = $region32
        $region31: #{tpu_custom_call.1} parent=27 // pred_region
          %228 = dma.done %s221, 128
        $region32: #{tpu_custom_call.1} parent=27 // pred_fallthru
          _
        %s229 = sand.u32 %s85, 1
        %s230 = scalar_lea.sflag [#allocation9], %s229
        %s231 = sand.u32 %s85, 1
        %s232 = smul.addr %s231, 128
        %s233 = scalar_lea.vmem [#allocation8], %s232
        // Predicated region
        $region33: #{tpu_custom_call.1} parent=27 // pred_check
          %p234 = pneg %p98
        $region34: #{tpu_custom_call.1} parent=27 // pred_check_branch
          %236 = sbr.rel (%p234) target = $region36
        $region35: #{tpu_custom_call.1} parent=27 // pred_region
          %237 = dma.done %s230, 2048
        $region36: #{tpu_custom_call.1} parent=27 // pred_fallthru
          _
        %s238 = sand.u32 %s59, 1
        %s239 = scalar_lea.sflag [#allocation6], %s238
        %s240 = sand.u32 %s59, 1
        %s241 = smul.addr %s240, 8
        %s242 = scalar_lea.vmem [#allocation5], %s241
        %p243 = pneg %p72
        %p244 = pneg %p69
        %s245 = sand.u32 %s85, 1
        %s246 = scalar_lea.sflag [#allocation9], %s245
        %s247 = sand.u32 %s85, 1
        %s248 = smul.addr %s247, 128
        %s249 = scalar_lea.vmem [#allocation8], %s248
        %p250 = pneg %p98
        %p251 = pneg %p95
        %p252 = pneg %p126
        %p253 = pneg %p123
        %s254 = sand.u32 %s113, 1
        %s255 = scalar_lea.sflag [#allocation7], %s254
        %s256 = sand.u32 %s113, 1
        %s257 = smul.addr %s256, 8
        %s258 = scalar_lea.vmem [#allocation10], %s257
        %p259 = pneg %p154
        %p260 = pneg %p151
        %s261 = sand.u32 %s141, 1
        %s262 = scalar_lea.sflag [#allocation12], %s261
        %s263 = sand.u32 %s141, 1
        %s264 = smul.addr %s263, 8
        %s265 = scalar_lea.vmem [#allocation11], %s264
        %s266 = sld [smem:[#allocation3 + %s41]]
        %s267 = sld [smem:[#allocation4 + %s41]]
        %v268 = vld [vmem:[%s224] sm:$0xff]
        %v269 = vld [vmem:[%s233] sm:$0xff]
        %v270 = vld [vmem:[%s233 + $0x8] sm:$0xff]
        %v271 = vld [vmem:[%s233 + $0x10] sm:$0xff]
        %v272 = vld [vmem:[%s233 + $0x18] sm:$0xff]
        %v273 = vld [vmem:[%s233 + $0x20] sm:$0xff]
        %v274 = vld [vmem:[%s233 + $0x28] sm:$0xff]
        %v275 = vld [vmem:[%s233 + $0x30] sm:$0xff]
        %v276 = vld [vmem:[%s233 + $0x38] sm:$0xff]
        %v277 = vld [vmem:[%s233 + $0x40] sm:$0xff]
        %v278 = vld [vmem:[%s233 + $0x48] sm:$0xff]
        %v279 = vld [vmem:[%s233 + $0x50] sm:$0xff]
        %v280 = vld [vmem:[%s233 + $0x58] sm:$0xff]
        %v281 = vld [vmem:[%s233 + $0x60] sm:$0xff]
        %v282 = vld [vmem:[%s233 + $0x68] sm:$0xff]
        %v283 = vld [vmem:[%s233 + $0x70] sm:$0xff]
        %v284 = vld [vmem:[%s233 + $0x78] sm:$0xff]
        %v285 = vlaneseq
        %v286 = vand.u32 %v285, 127
        %v287 = vstv %s267
        %vm288 = vcmp.lt.s32.totalorder %v286, %v287
        %v289 = vsel %vm288, 0.0, -inf
        %v290 = vlaneseq
        %v291 = vshrl.u32 %v290, 7
        %s292 = smul.u32 %s42, 8
        %v293 = vstv %s292
        %v294 = vadd.s32 %v291, %v293
        %v295 = vstv %s266
        %vm296 = vcmp.lt.s32.totalorder %v294, %v295
        %297 = vmatprep.subr.mxu0 0.0
        %298 = vmatpush1.xpose.msra.mxu0 %v269
        %299 = vmatprep.subr.mxu0 0.0
        %300 = vmatpush1.xpose.msra.mxu0 %v270
        %301 = vmatprep.subr.mxu0 0.0
        %302 = vmatpush1.xpose.msra.mxu0 %v271
        %303 = vmatprep.subr.mxu0 0.0
        %304 = vmatpush1.xpose.msra.mxu0 %v272
        %305 = vmatprep.subr.mxu0 0.0
        %306 = vmatpush1.xpose.msra.mxu0 %v273
        %307 = vmatprep.subr.mxu0 0.0
        %308 = vmatpush1.xpose.msra.mxu0 %v274
        %309 = vmatprep.subr.mxu0 0.0
        %310 = vmatpush1.xpose.msra.mxu0 %v275
        %311 = vmatprep.subr.mxu0 0.0
        %312 = vmatpush1.xpose.msra.mxu0 %v276
        %313 = vmatprep.subr.mxu0 0.0
        %314 = vmatpush1.xpose.msra.mxu0 %v277
        %315 = vmatprep.subr.mxu0 0.0
        %316 = vmatpush1.xpose.msra.mxu0 %v278
        %317 = vmatprep.subr.mxu0 0.0
        %318 = vmatpush1.xpose.msra.mxu0 %v279
        %319 = vmatprep.subr.mxu0 0.0
        %320 = vmatpush1.xpose.msra.mxu0 %v280
        %321 = vmatprep.subr.mxu0 0.0
        %322 = vmatpush1.xpose.msra.mxu0 %v281
        %323 = vmatprep.subr.mxu0 0.0
        %324 = vmatpush1.xpose.msra.mxu0 %v282
        %325 = vmatprep.subr.mxu0 0.0
        %326 = vmatpush1.xpose.msra.mxu0 %v283
        %327 = vmatprep.subr.mxu0 0.0
        %328 = vmatpush1.xpose.msra.mxu0 %v284
        %329 = vmatprep.subr.mxu0 0.0
        %330 = vmatpush1.xpose.msra.mxu0 0.0
        %331 = vmatprep.subr.mxu0 0.0
        %332 = vmatpush1.xpose.msra.mxu0 0.0
        %333 = vmatprep.subr.mxu0 0.0
        %334 = vmatpush1.xpose.msra.mxu0 0.0
        %335 = vmatprep.subr.mxu0 0.0
        %336 = vmatpush1.xpose.msra.mxu0 0.0
        %337 = vmatprep.subr.mxu0 0.0
        %338 = vmatpush1.xpose.msra.mxu0 0.0
        %339 = vmatprep.subr.mxu0 0.0
        %340 = vmatpush1.xpose.msra.mxu0 0.0
        %341 = vmatprep.subr.mxu0 0.0
        %342 = vmatpush1.xpose.msra.mxu0 0.0
        %343 = vmatprep.subr.mxu0 0.0
        %344 = vmatpush1.xpose.msra.mxu0 0.0
        %345 = vmatprep.subr.mxu0 0.0
        %346 = vmatpush1.xpose.msra.mxu0 0.0
        %347 = vmatprep.subr.mxu0 0.0
        %348 = vmatpush1.xpose.msra.mxu0 0.0
        %349 = vmatprep.subr.mxu0 0.0
        %350 = vmatpush1.xpose.msra.mxu0 0.0
        %351 = vmatprep.subr.mxu0 0.0
        %352 = vmatpush1.xpose.msra.mxu0 0.0
        %353 = vmatprep.subr.mxu0 0.0
        %354 = vmatpush1.xpose.msra.mxu0 0.0
        %355 = vmatprep.subr.mxu0 0.0
        %356 = vmatpush1.xpose.msra.mxu0 0.0
        %357 = vmatprep.subr.mxu0 0.0
        %358 = vmatpush1.xpose.msra.mxu0 0.0
        %359 = vmatprep.subr.mxu0 0.0
        %360 = vmatpush1.xpose.msra.mxu0 0.0
        %361 = vmatprep.mubr.f32.mxu0 0.0
        %362 = vmatmul.mubr.f32.gmra.mrb[0].mxu0 %v268
        %v363 = vpop.f32.mrb[0].mxu0
        %v364 = vadd.f32 %v289, %v363
        %v365 = vpop.f32.mrb[0].mxu0
        %366 = vdwg.mxu0
        %367 = vmax.xlane.f32.xlu0 %v364
        %v368 = vpop.xlane.xlu0 %367
        %v369 = vmax.f32 %v368, -3.4028235e+38
        %v370 = vsub.f32 %v364, %v369
        %v371 = vmul.f32 %v370, 1.442695
        %v372 = vpow.pop %v371
        %373 = vadd.xlane.f32.xlu0 %v372
        %v374 = vpop.xlane.xlu0 %373
        %v375 = vrcp.pop %v374
        %v376 = vmul.f32 %v374, %v375
        %v377 = vsub.f32 2.0, %v376
        %v378 = vmul.f32 %v375, %v377
        %vm379 = vcmp.gt.f32.partialorder %v374, 0.0
        %vm380 = vmand %vm296, %vm379
        %v381 = vmul.f32 %v372, %v378
        %v382 = vsel %vm380, 1, 0
        %vm383 = vcmp.eq.s32.totalorder %v382, 1
        %v384 = vsel %vm383, %v381, 0.0
        %385 = vmatprep.subr.mxu0 0.0
        %386 = vmatpush1.msra.mxu0 %v269
        %387 = vmatprep.subr.mxu0 0.0
        %388 = vmatpush1.msra.mxu0 %v270
        %389 = vmatprep.subr.mxu0 0.0
        %390 = vmatpush1.msra.mxu0 %v271
        %391 = vmatprep.subr.mxu0 0.0
        %392 = vmatpush1.msra.mxu0 %v272
        %393 = vmatprep.subr.mxu0 0.0
        %394 = vmatpush1.msra.mxu0 %v273
        %395 = vmatprep.subr.mxu0 0.0
        %396 = vmatpush1.msra.mxu0 %v274
        %397 = vmatprep.subr.mxu0 0.0
        %398 = vmatpush1.msra.mxu0 %v275
        %399 = vmatprep.subr.mxu0 0.0
        %400 = vmatpush1.msra.mxu0 %v276
        %401 = vmatprep.subr.mxu0 0.0
        %402 = vmatpush1.msra.mxu0 %v277
        %403 = vmatprep.subr.mxu0 0.0
        %404 = vmatpush1.msra.mxu0 %v278
        %405 = vmatprep.subr.mxu0 0.0
        %406 = vmatpush1.msra.mxu0 %v279
        %407 = vmatprep.subr.mxu0 0.0
        %408 = vmatpush1.msra.mxu0 %v280
        %409 = vmatprep.subr.mxu0 0.0
        %410 = vmatpush1.msra.mxu0 %v281
        %411 = vmatprep.subr.mxu0 0.0
        %412 = vmatpush1.msra.mxu0 %v282
        %413 = vmatprep.subr.mxu0 0.0
        %414 = vmatpush1.msra.mxu0 %v283
        %415 = vmatprep.subr.mxu0 0.0
        %416 = vmatpush1.msra.mxu0 %v284
        %417 = vmatprep.subr.mxu0 0.0
        %418 = vmatpush1.msra.mxu0 0.0
        %419 = vmatprep.subr.mxu0 0.0
        %420 = vmatpush1.msra.mxu0 0.0
        %421 = vmatprep.subr.mxu0 0.0
        %422 = vmatpush1.msra.mxu0 0.0
        %423 = vmatprep.subr.mxu0 0.0
        %424 = vmatpush1.msra.mxu0 0.0
        %425 = vmatprep.subr.mxu0 0.0
        %426 = vmatpush1.msra.mxu0 0.0
        %427 = vmatprep.subr.mxu0 0.0
        %428 = vmatpush1.msra.mxu0 0.0
        %429 = vmatprep.subr.mxu0 0.0
        %430 = vmatpush1.msra.mxu0 0.0
        %431 = vmatprep.subr.mxu0 0.0
        %432 = vmatpush1.msra.mxu0 0.0
        %433 = vmatprep.subr.mxu0 0.0
        %434 = vmatpush1.msra.mxu0 0.0
        %435 = vmatprep.subr.mxu0 0.0
        %436 = vmatpush1.msra.mxu0 0.0
        %437 = vmatprep.subr.mxu0 0.0
        %438 = vmatpush1.msra.mxu0 0.0
        %439 = vmatprep.subr.mxu0 0.0
        %440 = vmatpush1.msra.mxu0 0.0
        %441 = vmatprep.subr.mxu0 0.0
        %442 = vmatpush1.msra.mxu0 0.0
        %443 = vmatprep.subr.mxu0 0.0
        %444 = vmatpush1.msra.mxu0 0.0
        %445 = vmatprep.subr.mxu0 0.0
        %446 = vmatpush1.msra.mxu0 0.0
        %447 = vmatprep.subr.mxu0 0.0
        %448 = vmatpush1.msra.mxu0 0.0
        %449 = vmatprep.mubr.f32.mxu0 0.0
        %450 = vmatmul.mubr.f32.gmra.mrb[0].mxu0 %v384
        %v451 = vpop.f32.mrb[0].mxu0
        %v452 = vadd.f32 0.0, %v451
        %v453 = vpop.f32.mrb[0].mxu0
        %454 = vdwg.mxu0
        %455 = vst [vmem:[%s258] sm:$0xff] %v452
        %456 = vst [vmem:[%s265] sm:$0xff] %v384
        %s457 = sand.u32 %s113, 1
        %s458 = scalar_lea.sflag [#allocation7], %s457
        %s459 = sand.u32 %s113, 1
        %s460 = smul.addr %s459, 8
        %s461 = scalar_lea.vmem [#allocation10], %s460
        %s462 = sand.u32 %s141, 1
        %s463 = scalar_lea.sflag [#allocation12], %s462
        %s464 = sand.u32 %s141, 1
        %s465 = smul.addr %s464, 8
        %s466 = scalar_lea.vmem [#allocation11], %s465
        // Predicated region
        $region37: #{tpu_custom_call.1} parent=27 // pred_check
          %p467 = pneg %p123
        $region38: #{tpu_custom_call.1} parent=27 // pred_check_branch
          %469 = sbr.rel (%p467) target = $region40
        $region39: #{tpu_custom_call.1} parent=27 // pred_region
          %s471 = ssub.s32 128, 128
          %472 = vsyncadd %s458, %s471
          %s473 = sadd.s32 %s42, %s41
          %s474 = smul.addr %s473, 128
          %s475 = scalar_lea.hbm %s4, %s474
          %s477 = sshll.u32 %s461, 4
          %s478 = int_to_ptr.vmem [resolvable:$true] %s477
          %480 = dma.vmem_to_hbm [thread:$0]  %s478, 128, %s475, %s458
        $region40: #{tpu_custom_call.1} parent=27 // pred_fallthru
          _
        // Predicated region
        $region41: #{tpu_custom_call.1} parent=27 // pred_check
          %p481 = pneg %p151
        $region42: #{tpu_custom_call.1} parent=27 // pred_check_branch
          %483 = sbr.rel (%p481) target = $region44
        $region43: #{tpu_custom_call.1} parent=27 // pred_region
          %s485 = ssub.s32 128, 128
          %486 = vsyncadd %s463, %s485
          %s487 = sadd.s32 %s42, %s41
          %s488 = smul.addr %s487, 128
          %s489 = scalar_lea.hbm %s5, %s488
          %s491 = sshll.u32 %s466, 4
          %s492 = int_to_ptr.vmem [resolvable:$true] %s491
          %494 = dma.vmem_to_hbm [thread:$0]  %s492, 128, %s489, %s463
        $region44: #{tpu_custom_call.1} parent=27 // pred_fallthru
          _
      $region28: #{tpu_custom_call.1} parent=5 // pred_fallthru
        _
      %p495 = scmp.le.s32.totalorder 2, %s32
      // Predicated region
      $region45: #{tpu_custom_call.1} parent=5 // pred_check
        %p496 = pneg %p495
      $region46: #{tpu_custom_call.1} parent=5 // pred_check_branch
        %498 = sbr.rel (%p496) target = $region48
      $region47: #{tpu_custom_call.1} parent=5 // pred_region
        %s499 = ssub.s32 %s32, 2
        // Predicated region
        $region49: #{tpu_custom_call.1} parent=47 // pred_check
          %p500 = pneg %p129
        $region50: #{tpu_custom_call.1} parent=47 // pred_check_branch
          %502 = sbr.rel (%p500) target = $region52
        $region51: #{tpu_custom_call.1} parent=47 // pred_region
          %s503 = sand.u32 %s114, 1
          %s504 = scalar_lea.sflag [#allocation7], %s503
          %s505 = sand.u32 %s114, 1
          %s506 = smul.addr %s505, 8
          %s507 = scalar_lea.vmem [#allocation10], %s506
          %508 = dma.done %s504, 128
        $region52: #{tpu_custom_call.1} parent=47 // pred_fallthru
          _
        // Predicated region
        $region53: #{tpu_custom_call.1} parent=47 // pred_check
          %p509 = pneg %p157
        $region54: #{tpu_custom_call.1} parent=47 // pred_check_branch
          %511 = sbr.rel (%p509) target = $region56
        $region55: #{tpu_custom_call.1} parent=47 // pred_region
          %s512 = sand.u32 %s142, 1
          %s513 = scalar_lea.sflag [#allocation12], %s512
          %s514 = sand.u32 %s142, 1
          %s515 = smul.addr %s514, 8
          %s516 = scalar_lea.vmem [#allocation11], %s515
          %517 = dma.done %s513, 128
        $region56: #{tpu_custom_call.1} parent=47 // pred_fallthru
          _
      $region48: #{tpu_custom_call.1} parent=5 // pred_fallthru
        _
    $region6: #{tpu_custom_call.1} parent=1 // loop_footer
      %s36 = sadd.s32 1, %s32
    $region7: #{tpu_custom_call.1} parent=1 // loop_footer_branch
      %31 = sbr.rel target = $region3
    $region8: #{tpu_custom_call.1} parent=1 // loop_exit
      _
    %518 = vsyncpa [#allocation6], 1
    %s519 = scalar_lea.sflag [#allocation6], 1
    %520 = vsyncpa %s519, 1
    %521 = vsyncpa [#allocation9], 1
    %s522 = scalar_lea.sflag [#allocation9], 1
    %523 = vsyncpa %s522, 1
    %524 = vsyncpa [#allocation7], 1
    %s525 = scalar_lea.sflag [#allocation7], 1
    %526 = vsyncpa %s525, 1
    %527 = vsyncpa [#allocation12], 1
    %s528 = scalar_lea.sflag [#allocation12], 1
    %529 = vsyncpa %s528, 1

</llo_original>
